<compile_context>
chip_gen: v7x
topology: tpu7x:2x2x1
jax: 0.10.0
libtpu: 0.0.40
codegen_flags: <defaults>
</compile_context>

<pallas_src>
import functools

import jax
import jax.numpy as jnp
from jax import lax
from jax.experimental import pallas as pl
from jax.experimental.pallas import tpu as pltpu

_LANES = 128
_MIN_ROWS = 8          # sublane granularity
_MAX_TILE_ROWS = 2048  # 2048 x 128 x 4B = 1 MiB per f32 block buffer


def _cdiv(a: int, b: int) -> int:
    return -(-a // b)


def _round_up(x: int, m: int) -> int:
    return ((x + m - 1) // m) * m


def _l1_kernel_masked(pred_ref, label_ref, mask_ref, out_ref, acc_ref, *,
                      inv_n, n_rows, tm, tail_mask):
    i = pl.program_id(0)

    @pl.when(i == 0)
    def _():
        acc_ref[...] = jnp.zeros_like(acc_ref)

    p = pred_ref[...].astype(jnp.float32)
    t = label_ref[...].astype(jnp.float32)
    m = mask_ref[...].astype(jnp.float32)
    v = jnp.abs(p - t) * m                      # pure VPU per step
    if tail_mask:                               # static: only when blocks overrun rows
        rows_left = n_rows - i * tm
        row_ids = lax.broadcasted_iota(jnp.int32, v.shape, 0)
        v = jnp.where(row_ids < rows_left, v, 0.0)
    acc_ref[...] += v

    @pl.when(i == pl.num_programs(0) - 1)
    def _():
        # single cross-lane/sublane reduce + scale, only once
        out_ref[0, 0] = jnp.sum(acc_ref[...]) * jnp.float32(inv_n)


def _l1_kernel_plain(pred_ref, label_ref, out_ref, acc_ref, *,
                     inv_n, n_rows, tm, tail_mask):
    i = pl.program_id(0)

    @pl.when(i == 0)
    def _():
        acc_ref[...] = jnp.zeros_like(acc_ref)

    p = pred_ref[...].astype(jnp.float32)
    t = label_ref[...].astype(jnp.float32)
    v = jnp.abs(p - t)
    if tail_mask:
        rows_left = n_rows - i * tm
        row_ids = lax.broadcasted_iota(jnp.int32, v.shape, 0)
        v = jnp.where(row_ids < rows_left, v, 0.0)
    acc_ref[...] += v

    @pl.when(i == pl.num_programs(0) - 1)
    def _():
        out_ref[0, 0] = jnp.sum(acc_ref[...]) * jnp.float32(inv_n)


def _lane_slab(x: jax.Array):
    """Flatten x into a lane-dense (rows, 128) slab.

    Zero-copy (pure reshape of a contiguous array) when the element count is
    already a multiple of 128 and spans >= 8 rows; otherwise only a small
    zero tail is padded (ragged totals / tiny inputs).
    """
    flat = x.reshape(-1)
    total = flat.shape[0]
    rows = max(_cdiv(total, _LANES), _MIN_ROWS)
    padded = rows * _LANES
    if padded != total:
        flat = jnp.pad(flat, (0, padded - total))
    return flat.reshape(rows, _LANES), rows


def l1_loss(pred: jax.Array, label: jax.Array, mask: jax.Array | None = None) -> jax.Array:
    """Pallas TPU implementation of DeepPose L1Loss.forward.

    Args:
      pred:  [N, K, 2] float array (f32 or bf16)
      label: [N, K, 2] float array
      mask:  optional [N, K] array (float or bool)
    Returns:
      scalar float32 loss
    """
    n, k, two = pred.shape
    assert two == 2, "expected pred/label of shape [N, K, 2]"
    inv_n = 1.0 / float(n)

    pred_slab, n_rows = _lane_slab(pred)
    label_slab, _ = _lane_slab(label)

    # Balanced tile rows: near-equal steps, multiple of 8, capped at 2048.
    steps = _cdiv(n_rows, _MAX_TILE_ROWS)
    tm = _round_up(_cdiv(n_rows, steps), _MIN_ROWS)
    grid_steps = _cdiv(n_rows, tm)
    tail_mask = (grid_steps * tm) != n_rows   # last block partial -> mask OOB rows

    block = pl.BlockSpec((tm, _LANES), lambda i: (i, 0))
    out_spec = pl.BlockSpec(memory_space=pltpu.MemorySpace.SMEM)
    out_shape = jax.ShapeDtypeStruct((1, 1), jnp.float32)
    scratch = [pltpu.VMEM((tm, _LANES), jnp.float32)]
    cparams = pltpu.CompilerParams(dimension_semantics=("arbitrary",))

    if mask is None:
        kernel = functools.partial(_l1_kernel_plain, inv_n=inv_n,
                                   n_rows=n_rows, tm=tm, tail_mask=tail_mask)
        out = pl.pallas_call(
            kernel,
            out_shape=out_shape,
            grid=(grid_steps,),
            in_specs=[block, block],
            out_specs=out_spec,
            scratch_shapes=scratch,
            compiler_params=cparams,
        )(pred_slab, label_slab)
    else:
        if mask.dtype == jnp.bool_:
            mask = mask.astype(jnp.bfloat16)   # narrow, exact for 0/1
        # Expand over the xy axis in the *narrow* dtype so it aligns
        # element-for-element with pred.reshape(N, 2K); widening to f32
        # happens in-kernel.
        mask_full = jnp.repeat(mask, 2, axis=1)          # [N, 2K]
        mask_slab, _ = _lane_slab(mask_full)
        kernel = functools.partial(_l1_kernel_masked, inv_n=inv_n,
                                   n_rows=n_rows, tm=tm, tail_mask=tail_mask)
        out = pl.pallas_call(
            kernel,
            out_shape=out_shape,
            grid=(grid_steps,),
            in_specs=[block, block, block],
            out_specs=out_spec,
            scratch_shapes=scratch,
            compiler_params=cparams,
        )(pred_slab, label_slab, mask_slab)

    return out[0, 0]


def _reference(pred, label, mask=None):
    losses = jnp.abs(pred.astype(jnp.float32) - label.astype(jnp.float32))
    if mask is not None:
        losses = losses * mask.astype(jnp.float32)[:, :, None]
    return jnp.mean(jnp.sum(losses, axis=(1, 2)), axis=0)


if __name__ == "__main__":
    key = jax.random.PRNGKey(0)
    k_pred, k_label, k_mask, k2 = jax.random.split(key, 4)

    # Small shapes matching the module: N=2 samples, K=8 keypoints, xy.
    N, K = 2, 8
    pred = jax.random.normal(k_pred, (N, K, 2), dtype=jnp.float32)
    label = jax.random.normal(k_label, (N, K, 2), dtype=jnp.float32)
    mask = (jax.random.uniform(k_mask, (N, K)) > 0.3).astype(jnp.float32)

    out_masked = jax.block_until_ready(l1_loss(pred, label, mask))
    ref_masked = _reference(pred, label, mask)
    assert jnp.allclose(out_masked, ref_masked, rtol=1e-5, atol=1e-6), (out_masked, ref_masked)

    out_plain = jax.block_until_ready(l1_loss(pred, label, None))
    ref_plain = _reference(pred, label, None)
    assert jnp.allclose(out_plain, ref_plain, rtol=1e-5, atol=1e-6), (out_plain, ref_plain)

    # Zero-copy path: total % 128 == 0 -> no wrapper pad, single balanced tile.
    N2, K2 = 2048, 17
    kp2, kl2, km2, k3 = jax.random.split(k2, 4)
    pred2 = jax.random.normal(kp2, (N2, K2, 2), dtype=jnp.float32)
    label2 = jax.random.normal(kl2, (N2, K2, 2), dtype=jnp.float32)
    mask2 = (jax.random.uniform(km2, (N2, K2)) > 0.3).astype(jnp.float32)
    out2 = jax.block_until_ready(l1_loss(pred2, label2, mask2))
    ref2 = _reference(pred2, label2, mask2)
    assert jnp.allclose(out2, ref2, rtol=1e-3, atol=1e-3), (out2, ref2)

    # Multi-step grid + ragged tail + partial last block (in-kernel row mask).
    N3, K3 = 10000, 17
    kp3, kl3, km3 = jax.random.split(k3, 3)
    pred3 = jax.random.normal(kp3, (N3, K3, 2), dtype=jnp.float32)
    label3 = jax.random.normal(kl3, (N3, K3, 2), dtype=jnp.float32)
    mask3 = jax.random.uniform(km3, (N3, K3)) > 0.3            # bool mask path
    out3 = jax.block_until_ready(l1_loss(pred3, label3, mask3))
    ref3 = _reference(pred3, label3, mask3)
    assert jnp.allclose(out3, ref3, rtol=1e-3, atol=1e-3), (out3, ref3)

    # bf16 inputs: no wrapper upcast, cast happens in-kernel.
    out_bf16 = jax.block_until_ready(
        l1_loss(pred.astype(jnp.bfloat16), label.astype(jnp.bfloat16), mask))
    ref_bf16 = _reference(pred.astype(jnp.bfloat16), label.astype(jnp.bfloat16), mask)
    assert jnp.allclose(out_bf16, ref_bf16, rtol=1e-2, atol=1e-2), (out_bf16, ref_bf16)

    print("KERNEL_OK")
</pallas_src>

<mosaic_0001>
module attributes {stable_mosaic.version = 11 : i64} {
  func.func @_l1_kernel_masked(%arg0: i32, %arg1: memref<8x128xf32, #tpu.memory_space<vmem>>, %arg2: memref<8x128xf32, #tpu.memory_space<vmem>>, %arg3: memref<8x128xf32, #tpu.memory_space<vmem>>, %arg4: memref<1x1xf32, #tpu.memory_space<smem>>, %arg5: memref<8x128xf32, #tpu.memory_space<vmem>>) attributes {dimension_semantics = [#tpu.dimension_semantics<arbitrary>], iteration_bounds = array<i64: 1>, scalar_prefetch = 0 : i64, scratch_operands = 1 : i64, tpu.core_type = #tpu.core_type<tc>, window_params = [{transform_indices = @transform_0, window_bounds = array<i64: 8, 128>}, {transform_indices = @transform_1, window_bounds = array<i64: 8, 128>}, {transform_indices = @transform_2, window_bounds = array<i64: 8, 128>}, {transform_indices = @transform_3, window_bounds = array<i64: 1, 1>}]} {
    %c0_i32 = arith.constant 0 : i32
    %0 = arith.cmpi eq, %arg0, %c0_i32 : i32
    %1 = arith.extui %0 : i1 to i32
    %c0_i32_0 = arith.constant 0 : i32
    %2 = arith.cmpi ne, %1, %c0_i32_0 : i32
    scf.if %2 {
      %cst = arith.constant 0.000000e+00 : f32
      %15 = vector.broadcast %cst : f32 to vector<8x128xf32>
      %c0_12 = arith.constant 0 : index
      %c0_13 = arith.constant 0 : index
      %16 = vector.load %arg5[%c0_12, %c0_13] : memref<8x128xf32, #tpu.memory_space<vmem>>, vector<8x128xf32>
      tpu.vector_store %arg5[%c0_12, %c0_13], %15 {strides = array<i32>} : memref<8x128xf32, #tpu.memory_space<vmem>>, vector<8x128xf32>,
    } else {
    }
    %c0 = arith.constant 0 : index
    %c0_1 = arith.constant 0 : index
    %3 = vector.load %arg1[%c0, %c0_1] : memref<8x128xf32, #tpu.memory_space<vmem>>, vector<8x128xf32>
    %c0_2 = arith.constant 0 : index
    %c0_3 = arith.constant 0 : index
    %4 = vector.load %arg2[%c0_2, %c0_3] : memref<8x128xf32, #tpu.memory_space<vmem>>, vector<8x128xf32>
    %c0_4 = arith.constant 0 : index
    %c0_5 = arith.constant 0 : index
    %5 = vector.load %arg3[%c0_4, %c0_5] : memref<8x128xf32, #tpu.memory_space<vmem>>, vector<8x128xf32>
    %6 = arith.subf %3, %4 : vector<8x128xf32>
    %7 = math.absf %6 : vector<8x128xf32>
    %8 = arith.mulf %7, %5 : vector<8x128xf32>
    %c0_6 = arith.constant 0 : index
    %c0_7 = arith.constant 0 : index
    %9 = vector.load %arg5[%c0_6, %c0_7] : memref<8x128xf32, #tpu.memory_space<vmem>>, vector<8x128xf32>
    %10 = arith.addf %9, %8 : vector<8x128xf32>
    %c0_8 = arith.constant 0 : index
    %c0_9 = arith.constant 0 : index
    %11 = vector.load %arg5[%c0_8, %c0_9] : memref<8x128xf32, #tpu.memory_space<vmem>>, vector<8x128xf32>
    tpu.vector_store %arg5[%c0_8, %c0_9], %10 {strides = array<i32>} : memref<8x128xf32, #tpu.memory_space<vmem>>, vector<8x128xf32>,
    %c0_i32_10 = arith.constant 0 : i32
    %12 = arith.cmpi eq, %arg0, %c0_i32_10 : i32
    %13 = arith.extui %12 : i1 to i32
    %c0_i32_11 = arith.constant 0 : i32
    %14 = arith.cmpi ne, %13, %c0_i32_11 : i32
    scf.if %14 {
      %c0_12 = arith.constant 0 : index
      %c0_13 = arith.constant 0 : index
      %15 = vector.load %arg5[%c0_12, %c0_13] : memref<8x128xf32, #tpu.memory_space<vmem>>, vector<8x128xf32>
      %16 = vector.shape_cast %15 : vector<8x128xf32> to vector<1x8x128xf32>
      %cst = arith.constant dense<0.000000e+00> : vector<1xf32>
      %17 = vector.multi_reduction <add>, %16, %cst [1, 2] : vector<1x8x128xf32> to vector<1xf32>
      %18 = vector.shape_cast %17 : vector<1xf32> to vector<1x1x1xf32>
      %19 = vector.extract %18[0, 0, 0] : f32 from vector<1x1x1xf32>
      %cst_14 = arith.constant 5.000000e-01 : f32
      %20 = arith.mulf %19, %cst_14 : f32
      %c0_15 = arith.constant 0 : index
      %c0_16 = arith.constant 0 : index
      %21 = memref.load %arg4[%c0_15, %c0_16] : memref<1x1xf32, #tpu.memory_space<smem>>
      memref.store %20, %arg4[%c0_15, %c0_16] : memref<1x1xf32, #tpu.memory_space<smem>>
    } else {
    }
    return
  }
  func.func @transform_0(%arg0: i32) -> (i32, i32) {
    %c0_i32 = arith.constant 0 : i32
    %c0_i32_0 = arith.constant 0 : i32
    return %arg0, %c0_i32 : i32, i32
  }
  func.func @transform_1(%arg0: i32) -> (i32, i32) {
    %c0_i32 = arith.constant 0 : i32
    %c0_i32_0 = arith.constant 0 : i32
    return %arg0, %c0_i32 : i32, i32
  }
  func.func @transform_2(%arg0: i32) -> (i32, i32) {
    %c0_i32 = arith.constant 0 : i32
    %c0_i32_0 = arith.constant 0 : i32
    return %arg0, %c0_i32 : i32, i32
  }
  func.func @transform_3(%arg0: i32) -> (i32, i32) {
    %c0_i32 = arith.constant 0 : i32
    %c0_i32_0 = arith.constant 0 : i32
    %c0_i32_1 = arith.constant 0 : i32
    return %c0_i32, %c0_i32_0 : i32, i32
  }
}

</mosaic_0001>

<llo_original>
// kernel: tpu_custom_call.1
$region0: #{tpu_custom_call.1}
  #allocation0 [shape = 'u32[]', space=smem, size = 0x4, offset = 0x4, fixed_abs, tag = 'smem constant byte address 0x4 - core index']
  #allocation1 [shape = 'u32[144,128]{1,0:T(1,128)}', space=vmem, size = 0x12000, scoped, tag = 'internal scratch']
  #allocation2 [shape = 'f32[8,128]{1,0:T(8,128)}', space=vmem, size = 0x1000, scoped, tag = 'scratch operand']
  %s0 = inlined_call_operand.hbm [shape: f32[8,128], index: 0, kind: input, shape index: {}]
  %s1 = inlined_call_operand.hbm [shape: f32[8,128], index: 1, kind: input, shape index: {}]
  %s2 = inlined_call_operand.hbm [shape: f32[8,128], index: 2, kind: input, shape index: {}]
  %s3 = inlined_call_operand.hbm [shape: f32[1,1], index: 3, kind: output, shape index: {}]
  %s4 = sld [smem:[#allocation0]]
  $region42: #{tpu_custom_call.1} parent=0
    _
  %s6 = ssub.s32 1, %s4
  %s7 = scalar_select 0, %s6, %s4
  $region1: #{tpu_custom_call.1} parent=0
    #allocation3 [shape = 'u8[4096]{0}', space=vmem, size = 0x1000, scoped, tag = 'input window, operand 0, single buffered']
    #allocation4 [shape = 's32[1]{0}', space=sflag, size = 0x4, scoped, tag = 'scoped memory for tpu_custom_call.1']
    #allocation5 [shape = 's32[1]{0}', space=sflag, size = 0x4, scoped, tag = 'scoped memory for tpu_custom_call.1']
    #allocation6 [shape = 'u8[4096]{0}', space=vmem, size = 0x1000, scoped, tag = 'input window, operand 1, single buffered']
    #allocation7 [shape = 's32[1]{0}', space=sflag, size = 0x4, scoped, tag = 'scoped memory for tpu_custom_call.1']
    #allocation8 [shape = 'u8[4096]{0}', space=vmem, size = 0x1000, scoped, tag = 'input window, operand 2, single buffered']
    #allocation9 [shape = 'u8[512]{0}', space=smem, size = 0x200, scoped, tag = 'output window, operand 0, single buffered']
    %8 = vsyncpa [#allocation4], 0
    %9 = vsyncpa [#allocation7], 0
    %10 = vsyncpa [#allocation5], 0
    // Predicated region
    $region2: #{tpu_custom_call.1} parent=1 // pred_check
      _
    $region3: #{tpu_custom_call.1} parent=1 // pred_check_branch
      %12 = sbr.rel (0) target = $region5
    $region4: #{tpu_custom_call.1} parent=1 // pred_region
      %s14 = ssub.s32 128, 128
      %15 = vsyncadd [#allocation4], %s14
      %s17 = sshll.u32 [#allocation3], 4
      %s18 = int_to_ptr.vmem [resolvable:$true] %s17
      %20 = dma.hbm_to_vmem [thread:$0]  %s0, 128, %s18, [#allocation4]
    $region5: #{tpu_custom_call.1} parent=1 // pred_fallthru
      _
    // Predicated region
    $region6: #{tpu_custom_call.1} parent=1 // pred_check
      _
    $region7: #{tpu_custom_call.1} parent=1 // pred_check_branch
      %22 = sbr.rel (0) target = $region9
    $region8: #{tpu_custom_call.1} parent=1 // pred_region
      %s24 = ssub.s32 128, 128
      %25 = vsyncadd [#allocation7], %s24
      %s27 = sshll.u32 [#allocation6], 4
      %s28 = int_to_ptr.vmem [resolvable:$true] %s27
      %30 = dma.hbm_to_vmem [thread:$0]  %s1, 128, %s28, [#allocation7]
    $region9: #{tpu_custom_call.1} parent=1 // pred_fallthru
      _
    // Predicated region
    $region10: #{tpu_custom_call.1} parent=1 // pred_check
      _
    $region11: #{tpu_custom_call.1} parent=1 // pred_check_branch
      %32 = sbr.rel (0) target = $region13
    $region12: #{tpu_custom_call.1} parent=1 // pred_region
      %s34 = ssub.s32 128, 128
      %35 = vsyncadd [#allocation7], %s34
      %s37 = sshll.u32 [#allocation8], 4
      %s38 = int_to_ptr.vmem [resolvable:$true] %s37
      %40 = dma.hbm_to_vmem [thread:$0]  %s2, 128, %s38, [#allocation7]
    $region13: #{tpu_custom_call.1} parent=1 // pred_fallthru
      _
    // Predicated region
    $region14: #{tpu_custom_call.1} parent=1 // pred_check
      _
    $region15: #{tpu_custom_call.1} parent=1 // pred_check_branch
      %42 = sbr.rel (0) target = $region17
    $region16: #{tpu_custom_call.1} parent=1 // pred_region
      %43 = dma.done [#allocation4], 128
    $region17: #{tpu_custom_call.1} parent=1 // pred_fallthru
      _
    // Predicated region
    $region18: #{tpu_custom_call.1} parent=1 // pred_check
      _
    $region19: #{tpu_custom_call.1} parent=1 // pred_check_branch
      %45 = sbr.rel (0) target = $region21
    $region20: #{tpu_custom_call.1} parent=1 // pred_region
      %46 = dma.done [#allocation7], 128
    $region21: #{tpu_custom_call.1} parent=1 // pred_fallthru
      _
    // Predicated region
    $region22: #{tpu_custom_call.1} parent=1 // pred_check
      _
    $region23: #{tpu_custom_call.1} parent=1 // pred_check_branch
      %48 = sbr.rel (0) target = $region25
    $region24: #{tpu_custom_call.1} parent=1 // pred_region
      %49 = dma.done [#allocation7], 128
    $region25: #{tpu_custom_call.1} parent=1 // pred_fallthru
      _
    %p50 = scmp.eq.s32.totalorder 0, 0
    // Predicated region
    $region26: #{tpu_custom_call.1} parent=1 // pred_check
      %p51 = pneg %p50
    $region27: #{tpu_custom_call.1} parent=1 // pred_check_branch
      %53 = sbr.rel (%p51) target = $region29
    $region28: #{tpu_custom_call.1} parent=1 // pred_region
      %54 = vst [vmem:[#allocation2] sm:$0xff] 0.0
    $region29: #{tpu_custom_call.1} parent=1 // pred_fallthru
      _
    %v55 = vld [vmem:[#allocation3] sm:$0xff]
    %v56 = vld [vmem:[#allocation6] sm:$0xff]
    %v57 = vld [vmem:[#allocation8] sm:$0xff]
    %v58 = vsub.f32 %v55, %v56
    %v59 = vand.u32 2147483647, %v58
    %v60 = vmul.f32 %v59, %v57
    %v61 = vld [vmem:[#allocation2] sm:$0xff]
    %v62 = vadd.f32 %v61, %v60
    %63 = vst [vmem:[#allocation2] sm:$0xff] %v62
    // Predicated region
    $region30: #{tpu_custom_call.1} parent=1 // pred_check
      %p64 = pneg %p50
    $region31: #{tpu_custom_call.1} parent=1 // pred_check_branch
      %66 = sbr.rel (%p64) target = $region33
    $region32: #{tpu_custom_call.1} parent=1 // pred_region
      %v67 = vld [vmem:[#allocation2] sm:$0xff]
      %68 = vadd.xlane.f32.xlu0 %v67
      %v69 = vpop.xlane.xlu0 %68
      %v70 = vrot.slane %v69, 4
      %v71 = vadd.f32 %v69, %v70
      %v72 = vrot.slane %v71, 2
      %v73 = vadd.f32 %v71, %v72
      %v74 = vrot.slane %v73, 1
      %v75 = vadd.f32 %v73, %v74
      %s76 = vtos %v75
      %s77 = smul.f32 %s76, 0.5
      %s78 = scalar_lea.smem [#allocation9], 0
      %79 = sst [smem:[%s78]] %s77
    $region33: #{tpu_custom_call.1} parent=1 // pred_fallthru
      _
    // Predicated region
    $region34: #{tpu_custom_call.1} parent=1 // pred_check
      _
    $region35: #{tpu_custom_call.1} parent=1 // pred_check_branch
      %81 = sbr.rel (0) target = $region37
    $region36: #{tpu_custom_call.1} parent=1 // pred_region
      %s83 = ssub.s32 16, 16
      %84 = vsyncadd [#allocation5], %s83
      %87 = dma.smem_to_hbm [#allocation9], 16, %s3, [#allocation5]
    $region37: #{tpu_custom_call.1} parent=1 // pred_fallthru
      _
    // Predicated region
    $region38: #{tpu_custom_call.1} parent=1 // pred_check
      _
    $region39: #{tpu_custom_call.1} parent=1 // pred_check_branch
      %89 = sbr.rel (0) target = $region41
    $region40: #{tpu_custom_call.1} parent=1 // pred_region
      %90 = dma.done [#allocation5], 16
    $region41: #{tpu_custom_call.1} parent=1 // pred_fallthru
      _
    %91 = sfence
    %92 = vsyncpa [#allocation4], 1
    %93 = vsyncpa [#allocation7], 1
    %94 = vsyncpa [#allocation5], 1

</llo_original>
